<compile_context>
chip_gen: v7x
topology: tpu7x:2x2x1
jax: 0.10.0
libtpu: 0.0.40
codegen_flags: <defaults>
</compile_context>

<pallas_src>
import math
import functools

import jax
import jax.numpy as jnp
from jax import lax
from jax.experimental import pallas as pl
from jax.experimental.pallas import tpu as pltpu


# -----------------------------------------------------------------------------
# helpers
# -----------------------------------------------------------------------------
def _layernorm(x, eps=1e-5):
    # torch.nn.LayerNorm(elementwise_affine=False): biased variance, eps=1e-5
    mu = jnp.mean(x, axis=-1, keepdims=True)
    var = jnp.mean((x - mu) ** 2, axis=-1, keepdims=True)
    return (x - mu) * jax.lax.rsqrt(var + eps)


def _softmax_rows(scores):
    # hand-rolled, numerically-stable softmax; reciprocal goes to the EUP slot
    m = jnp.max(scores, axis=-1, keepdims=True)
    p = jnp.exp(scores - m)
    return p * pl.reciprocal(jnp.sum(p, axis=-1, keepdims=True), approx=True)


# -----------------------------------------------------------------------------
# Kernel 1: ParameterAttention on the key/value slot groups ONLY, fused with the
#           batch-invariant GQA key/value projections.
#   slots(kv) -> param-attn -> (@ g_wk / @ g_wv) -> (NS, D) bf16 each
# -----------------------------------------------------------------------------
def slots_kernel(slots_ref, pa_wq_ref, pa_wk_ref, pa_wv_ref, pa_wo_ref,
                 g_wk_ref, g_wv_ref, k_out_ref, v_out_ref, *, d_head):
    scale = 1.0 / math.sqrt(d_head)
    wq = pa_wq_ref[...]
    wk = pa_wk_ref[...]
    wv = pa_wv_ref[...]
    wo = pa_wo_ref[...]

    def one_group(i, g_w_ref, out_ref):
        s = slots_ref[i]                                           # (NS, D) bf16
        q = jnp.dot(s, wq, preferred_element_type=jnp.float32)
        k = jnp.dot(s, wk, preferred_element_type=jnp.float32)
        v = jnp.dot(s, wv, preferred_element_type=jnp.float32)
        sc = lax.dot_general(q.astype(jnp.bfloat16), k.astype(jnp.bfloat16),
                             (((1,), (1,)), ((), ())),
                             preferred_element_type=jnp.float32) * scale
        w = _softmax_rows(sc)
        o = jnp.dot(w.astype(jnp.bfloat16), v.astype(jnp.bfloat16),
                    preferred_element_type=jnp.float32)
        o = jnp.dot(o.astype(jnp.bfloat16), wo,
                    preferred_element_type=jnp.float32)            # param-attn output
        out_ref[...] = jnp.dot(o.astype(jnp.bfloat16), g_w_ref[...],
                               preferred_element_type=jnp.float32
                               ).astype(out_ref.dtype)             # fused GQA k/v proj

    one_group(0, g_wk_ref, k_out_ref)   # slot group 1 (key)
    one_group(1, g_wv_ref, v_out_ref)   # slot group 2 (value)


# -----------------------------------------------------------------------------
# Kernel 2: per-(batch, seq-tile) TokenFormer block body
#   GQA (rotary on query only) + residual + LN1 + FFN(gelu) + residual + LN2
# -----------------------------------------------------------------------------
def block_kernel(x_ref, k_ref, v_ref, cos_ref, sin_ref,
                 wq_ref, wqr_ref, wo_ref, w1_ref, w2_ref,
                 out_ref, attn_scr, *, num_groups):
    x = x_ref[0]                                   # (TS, D) f32
    D = x.shape[-1]
    dh = D // num_groups
    scale = 1.0 / math.sqrt(dh)

    xb = x.astype(jnp.bfloat16)
    q = jnp.dot(xb, wq_ref[...], preferred_element_type=jnp.float32)     # (TS, D)
    q_rh = jnp.dot(xb, wqr_ref[...], preferred_element_type=jnp.float32)  # rotate_half(q) via folded perm
    # rotary on query only (key untouched), full-width tables: cos=1 / sin=0 past rotary_dim
    q = q * cos_ref[...] + q_rh * sin_ref[...]
    qb = q.astype(jnp.bfloat16)

    k = k_ref[...]                                  # (NS, D) bf16, batch-invariant
    v = v_ref[...]

    # grouped attention: static loop over heads, results written to VMEM scratch at
    # static column offsets (no concatenate chain)
    for g in range(num_groups):
        sl = slice(g * dh, (g + 1) * dh)
        sc = lax.dot_general(qb[:, sl], k[:, sl], (((1,), (1,)), ((), ())),
                             preferred_element_type=jnp.float32) * scale  # (TS, NS)
        w = _softmax_rows(sc)
        attn_scr[:, sl] = jnp.dot(w.astype(jnp.bfloat16), v[:, sl],
                                  preferred_element_type=jnp.float32)

    attn = jnp.dot(attn_scr[...].astype(jnp.bfloat16), wo_ref[...],
                   preferred_element_type=jnp.float32)

    h = _layernorm(x + attn)

    ffn_h = jnp.dot(h.astype(jnp.bfloat16), w1_ref[...],
                    preferred_element_type=jnp.float32)
    ffn_h = jax.nn.gelu(ffn_h, approximate=False)   # matches torch F.gelu (exact erf)
    ffn_o = jnp.dot(ffn_h.astype(jnp.bfloat16), w2_ref[...],
                    preferred_element_type=jnp.float32)

    out_ref[0] = _layernorm(h + ffn_o)


# -----------------------------------------------------------------------------
# wrapper
# -----------------------------------------------------------------------------
def tokenformer_block(x, qkv_slots, params, *, num_groups, rotary_pct, seq_tile=None):
    B, S, D = x.shape
    NS = qkv_slots.shape[1]
    H = params["f_w1"].shape[1]
    d_head = D // num_groups
    rot = int(D * rotary_pct)
    bf16 = jnp.bfloat16

    # ---- one-time weight prep (tiny XLA glue): bf16 MXU inputs, f32 accumulation ------
    pa_wq = params["pa_wq"].astype(bf16)
    pa_wk = params["pa_wk"].astype(bf16)
    pa_wv = params["pa_wv"].astype(bf16)
    pa_wo = params["pa_wo"].astype(bf16)
    g_wk = params["g_wk"].astype(bf16)
    g_wv = params["g_wv"].astype(bf16)
    g_wo = params["g_wo"].astype(bf16)
    f_w1 = params["f_w1"].astype(bf16)
    f_w2 = params["f_w2"].astype(bf16)

    # rotate_half is a signed partial permutation R; fold it into the query projection
    # exactly: (x @ Wq) @ R == x @ (Wq @ R).
    R = jnp.zeros((D, D), jnp.float32)
    cos_full = jnp.ones((S, D), jnp.float32)
    sin_full = jnp.zeros((S, D), jnp.float32)
    if rot > 0:
        half = rot // 2
        j1 = jnp.arange(half)
        j2 = jnp.arange(half, rot)
        R = R.at[j1 + half, j1].set(-1.0)
        R = R.at[j2 - half, j2].set(1.0)
        pos = jnp.arange(S, dtype=jnp.float32)
        freq = jnp.arange(0, rot, 2, dtype=jnp.float32)
        inv_freq = 1.0 / (10000.0 ** (freq / rot))
        pe = pos[:, None] * inv_freq[None, :]
        cos_full = cos_full.at[:, :rot].set(jnp.tile(jnp.cos(pe), (1, 2)))
        sin_full = sin_full.at[:, :rot].set(jnp.tile(jnp.sin(pe), (1, 2)))
    g_wq = params["g_wq"].astype(bf16)
    g_wq_rot = (params["g_wq"] @ R).astype(bf16)

    # ---- Kernel 1: param attention (kv slot groups only) + fused k/v projections ------
    vmem = pl.BlockSpec(memory_space=pltpu.MemorySpace.VMEM)
    kproj, vproj = pl.pallas_call(
        functools.partial(slots_kernel, d_head=d_head),
        out_shape=(jax.ShapeDtypeStruct((NS, D), bf16),
                   jax.ShapeDtypeStruct((NS, D), bf16)),
        in_specs=[vmem] * 7,
        out_specs=(vmem, vmem),
    )(qkv_slots[1:3].astype(bf16), pa_wq, pa_wk, pa_wv, pa_wo, g_wk, g_wv)

    # ---- Kernel 2: GQA + FFN + layernorms, grid over (batch, seq tiles) ---------------
    if seq_tile is None:
        TS = S
        for cand in (512, 256, 128):
            if S % cand == 0:
                TS = cand
                break
    else:
        TS = seq_tile
    assert S % TS == 0, "sequence length must be divisible by the sequence tile"

    out = pl.pallas_call(
        functools.partial(block_kernel, num_groups=num_groups),
        out_shape=jax.ShapeDtypeStruct((B, S, D), jnp.float32),
        grid=(B, S // TS),
        in_specs=[
            pl.BlockSpec((1, TS, D), lambda b, s: (b, s, 0)),   # x tile
            pl.BlockSpec((NS, D), lambda b, s: (0, 0)),         # k (batch-invariant)
            pl.BlockSpec((NS, D), lambda b, s: (0, 0)),         # v (batch-invariant)
            pl.BlockSpec((TS, D), lambda b, s: (s, 0)),         # cos (full width)
            pl.BlockSpec((TS, D), lambda b, s: (s, 0)),         # sin (full width)
            pl.BlockSpec((D, D), lambda b, s: (0, 0)),          # g_wq
            pl.BlockSpec((D, D), lambda b, s: (0, 0)),          # g_wq @ R (rotate-half fold)
            pl.BlockSpec((D, D), lambda b, s: (0, 0)),          # g_wo
            pl.BlockSpec((D, H), lambda b, s: (0, 0)),          # ffn fc1
            pl.BlockSpec((H, D), lambda b, s: (0, 0)),          # ffn fc2
        ],
        out_specs=pl.BlockSpec((1, TS, D), lambda b, s: (b, s, 0)),
        scratch_shapes=[pltpu.VMEM((TS, D), jnp.float32)],       # per-head attn buffer
        compiler_params=pltpu.CompilerParams(
            dimension_semantics=("parallel", "parallel"),
            vmem_limit_bytes=64 * 1024 * 1024),
    )(x, kproj, vproj, cos_full, sin_full,
      g_wq, g_wq_rot, g_wo, f_w1, f_w2)
    return out


# -----------------------------------------------------------------------------
# pure-JAX f32 reference (mirrors the PyTorch forward) for verification
# -----------------------------------------------------------------------------
def tokenformer_block_ref(x, qkv_slots, params, *, num_groups, rotary_pct):
    B, S, D = x.shape
    dh = D // num_groups
    rot = int(D * rotary_pct)

    # ParameterAttention
    s = qkv_slots
    q = s @ params["pa_wq"]
    k = s @ params["pa_wk"]
    v = s @ params["pa_wv"]
    sc = jnp.einsum("bnd,bmd->bnm", q, k) / math.sqrt(dh)
    w = jax.nn.softmax(sc, axis=-1)
    qkv_params = jnp.einsum("bnm,bmd->bnd", w, v) @ params["pa_wo"]

    key = jnp.broadcast_to(qkv_params[1][None], (B,) + qkv_params[1].shape)
    value = jnp.broadcast_to(qkv_params[2][None], (B,) + qkv_params[2].shape)

    # GQA
    q = x @ params["g_wq"]
    k = key @ params["g_wk"]
    v = value @ params["g_wv"]
    pos = jnp.arange(S, dtype=jnp.float32)
    freq = jnp.arange(0, rot, 2, dtype=jnp.float32)
    inv_freq = 1.0 / (10000.0 ** (freq / rot))
    pe = pos[:, None] * inv_freq[None, :]
    cos = jnp.tile(jnp.cos(pe), (1, 2))
    sin = jnp.tile(jnp.sin(pe), (1, 2))
    q_rot, q_pass = q[..., :rot], q[..., rot:]
    rh = jnp.concatenate([-q_rot[..., rot // 2:], q_rot[..., :rot // 2]], axis=-1)
    q = jnp.concatenate([q_rot * cos[None] + rh * sin[None], q_pass], axis=-1)

    NS = k.shape[1]
    qh = q.reshape(B, S, num_groups, dh).transpose(0, 2, 1, 3)
    kh = k.reshape(B, NS, num_groups, dh).transpose(0, 2, 1, 3)
    vh = v.reshape(B, NS, num_groups, dh).transpose(0, 2, 1, 3)
    sc = jnp.einsum("bgsd,bgnd->bgsn", qh, kh) / math.sqrt(dh)
    w = jax.nn.softmax(sc, axis=-1)
    ao = jnp.einsum("bgsn,bgnd->bgsd", w, vh).transpose(0, 2, 1, 3).reshape(B, S, D)
    ao = ao @ params["g_wo"]

    h = _layernorm(x + ao)
    ffn = jax.nn.gelu(h @ params["f_w1"], approximate=False) @ params["f_w2"]
    return _layernorm(h + ffn)


# -----------------------------------------------------------------------------
if __name__ == "__main__":
    # small config consistent with the module
    B, S, D = 2, 8, 32
    num_groups = 4
    num_slots = 8
    expansion_factor = 2
    rotary_pct = 0.25
    H = D * expansion_factor

    key = jax.random.PRNGKey(0)
    ks = jax.random.split(key, 12)

    def w(k, shape, scale=0.05):
        return (jax.random.normal(k, shape, jnp.float32) * scale).astype(jnp.float32)

    x = jax.random.normal(ks[0], (B, S, D), jnp.float32)
    qkv_slots = jax.random.normal(ks[1], (3, num_slots, D), jnp.float32)
    params = {
        "pa_wq": w(ks[2], (D, D)), "pa_wk": w(ks[3], (D, D)),
        "pa_wv": w(ks[4], (D, D)), "pa_wo": w(ks[5], (D, D)),
        "g_wq": w(ks[6], (D, D)), "g_wk": w(ks[7], (D, D)),
        "g_wv": w(ks[8], (D, D)), "g_wo": w(ks[9], (D, D)),
        "f_w1": w(ks[10], (D, H)), "f_w2": w(ks[11], (H, D)),
    }

    out = tokenformer_block(x, qkv_slots, params,
                            num_groups=num_groups, rotary_pct=rotary_pct)
    out = jax.block_until_ready(out)

    ref = tokenformer_block_ref(x, qkv_slots, params,
                                num_groups=num_groups, rotary_pct=rotary_pct)
    ref = jax.block_until_ready(ref)

    assert out.shape == (B, S, D)
    assert bool(jnp.all(jnp.isfinite(out)))
    # bf16 MXU inputs (f32 accumulation) vs f32 reference -> modest tolerance
    assert bool(jnp.allclose(out, ref, atol=5e-2, rtol=5e-2)), "mismatch vs reference"
    print("KERNEL_OK")
</pallas_src>

<mosaic_0001>
module attributes {stable_mosaic.version = 11 : i64} {
  func.func @slots_kernel(%arg0: memref<2x8x32xbf16, #tpu.memory_space<vmem>>, %arg1: memref<32x32xbf16, #tpu.memory_space<vmem>>, %arg2: memref<32x32xbf16, #tpu.memory_space<vmem>>, %arg3: memref<32x32xbf16, #tpu.memory_space<vmem>>, %arg4: memref<32x32xbf16, #tpu.memory_space<vmem>>, %arg5: memref<32x32xbf16, #tpu.memory_space<vmem>>, %arg6: memref<32x32xbf16, #tpu.memory_space<vmem>>, %arg7: memref<8x32xbf16, #tpu.memory_space<vmem>>, %arg8: memref<8x32xbf16, #tpu.memory_space<vmem>>) attributes {dimension_semantics = [], scalar_prefetch = 0 : i64, scratch_operands = 0 : i64, tpu.core_type = #tpu.core_type<tc>} {
    %c0 = arith.constant 0 : index
    %c0_0 = arith.constant 0 : index
    %0 = vector.load %arg1[%c0, %c0_0] : memref<32x32xbf16, #tpu.memory_space<vmem>>, vector<32x32xbf16>
    %c0_1 = arith.constant 0 : index
    %c0_2 = arith.constant 0 : index
    %1 = vector.load %arg2[%c0_1, %c0_2] : memref<32x32xbf16, #tpu.memory_space<vmem>>, vector<32x32xbf16>
    %c0_3 = arith.constant 0 : index
    %c0_4 = arith.constant 0 : index
    %2 = vector.load %arg3[%c0_3, %c0_4] : memref<32x32xbf16, #tpu.memory_space<vmem>>, vector<32x32xbf16>
    %c0_5 = arith.constant 0 : index
    %c0_6 = arith.constant 0 : index
    %3 = vector.load %arg4[%c0_5, %c0_6] : memref<32x32xbf16, #tpu.memory_space<vmem>>, vector<32x32xbf16>
    %c0_7 = arith.constant 0 : index
    %c0_8 = arith.constant 0 : index
    %c0_9 = arith.constant 0 : index
    %4 = vector.load %arg0[%c0_7, %c0_8, %c0_9] : memref<2x8x32xbf16, #tpu.memory_space<vmem>>, vector<1x8x32xbf16>
    %5 = vector.shape_cast %4 : vector<1x8x32xbf16> to vector<8x32xbf16>
    %cst = arith.constant dense<0.000000e+00> : vector<8x32xf32>
    %6 = tpu.matmul %5, %0, %cst {dimension_numbers = #tpu.dot_dimension_numbers<[1], [0], [0], [1], [0, 0, 1, 1], [], []>} : vector<8x32xbf16>, vector<32x32xbf16>, vector<8x32xf32> -> vector<8x32xf32>
    %cst_10 = arith.constant dense<0.000000e+00> : vector<8x32xf32>
    %7 = tpu.matmul %5, %1, %cst_10 {dimension_numbers = #tpu.dot_dimension_numbers<[1], [0], [0], [1], [0, 0, 1, 1], [], []>} : vector<8x32xbf16>, vector<32x32xbf16>, vector<8x32xf32> -> vector<8x32xf32>
    %cst_11 = arith.constant dense<0.000000e+00> : vector<8x32xf32>
    %8 = tpu.matmul %5, %2, %cst_11 {dimension_numbers = #tpu.dot_dimension_numbers<[1], [0], [0], [1], [0, 0, 1, 1], [], []>} : vector<8x32xbf16>, vector<32x32xbf16>, vector<8x32xf32> -> vector<8x32xf32>
    %9 = arith.truncf %6 : vector<8x32xf32> to vector<8x32xbf16>
    %10 = arith.truncf %7 : vector<8x32xf32> to vector<8x32xbf16>
    %cst_12 = arith.constant dense<0.000000e+00> : vector<8x8xf32>
    %11 = tpu.matmul %9, %10, %cst_12 {dimension_numbers = #tpu.dot_dimension_numbers<[1], [1], [0], [0], [0, 0, 1, 0], [], []>} : vector<8x32xbf16>, vector<8x32xbf16>, vector<8x8xf32> -> vector<8x8xf32>
    %cst_13 = arith.constant 0.353553385 : f32
    %12 = vector.broadcast %cst_13 : f32 to vector<8x8xf32>
    %13 = arith.mulf %11, %12 : vector<8x8xf32>
    %cst_14 = arith.constant dense<0xFF800000> : vector<8xf32>
    %14 = vector.multi_reduction <maximumf>, %13, %cst_14 [1] : vector<8x8xf32> to vector<8xf32>
    %15 = vector.shape_cast %14 : vector<8xf32> to vector<8x1xf32>
    %16 = vector.broadcast %15 : vector<8x1xf32> to vector<8x8xf32>
    %17 = arith.subf %13, %16 : vector<8x8xf32>
    %18 = math.exp %17 : vector<8x8xf32>
    %cst_15 = arith.constant dense<0.000000e+00> : vector<8xf32>
    %19 = vector.multi_reduction <add>, %18, %cst_15 [1] : vector<8x8xf32> to vector<8xf32>
    %20 = vector.shape_cast %19 : vector<8xf32> to vector<8x1xf32>
    %21 = tpu.reciprocal %20 {approx = true} : vector<8x1xf32> -> vector<8x1xf32>
    %22 = vector.broadcast %21 : vector<8x1xf32> to vector<8x8xf32>
    %23 = arith.mulf %18, %22 : vector<8x8xf32>
    %24 = arith.truncf %23 : vector<8x8xf32> to vector<8x8xbf16>
    %25 = arith.truncf %8 : vector<8x32xf32> to vector<8x32xbf16>
    %cst_16 = arith.constant dense<0.000000e+00> : vector<8x32xf32>
    %26 = tpu.matmul %24, %25, %cst_16 {dimension_numbers = #tpu.dot_dimension_numbers<[1], [0], [0], [1], [0, 0, 1, 1], [], []>} : vector<8x8xbf16>, vector<8x32xbf16>, vector<8x32xf32> -> vector<8x32xf32>
    %27 = arith.truncf %26 : vector<8x32xf32> to vector<8x32xbf16>
    %cst_17 = arith.constant dense<0.000000e+00> : vector<8x32xf32>
    %28 = tpu.matmul %27, %3, %cst_17 {dimension_numbers = #tpu.dot_dimension_numbers<[1], [0], [0], [1], [0, 0, 1, 1], [], []>} : vector<8x32xbf16>, vector<32x32xbf16>, vector<8x32xf32> -> vector<8x32xf32>
    %29 = arith.truncf %28 : vector<8x32xf32> to vector<8x32xbf16>
    %c0_18 = arith.constant 0 : index
    %c0_19 = arith.constant 0 : index
    %30 = vector.load %arg5[%c0_18, %c0_19] : memref<32x32xbf16, #tpu.memory_space<vmem>>, vector<32x32xbf16>
    %cst_20 = arith.constant dense<0.000000e+00> : vector<8x32xf32>
    %31 = tpu.matmul %29, %30, %cst_20 {dimension_numbers = #tpu.dot_dimension_numbers<[1], [0], [0], [1], [0, 0, 1, 1], [], []>} : vector<8x32xbf16>, vector<32x32xbf16>, vector<8x32xf32> -> vector<8x32xf32>
    %32 = arith.truncf %31 : vector<8x32xf32> to vector<8x32xbf16>
    %c0_21 = arith.constant 0 : index
    %c0_22 = arith.constant 0 : index
    %33 = vector.load %arg7[%c0_21, %c0_22] : memref<8x32xbf16, #tpu.memory_space<vmem>>, vector<8x32xbf16>
    tpu.vector_store %arg7[%c0_21, %c0_22], %32 {strides = array<i32>} : memref<8x32xbf16, #tpu.memory_space<vmem>>, vector<8x32xbf16>,
    %c1 = arith.constant 1 : index
    %c0_23 = arith.constant 0 : index
    %c0_24 = arith.constant 0 : index
    %34 = vector.load %arg0[%c1, %c0_23, %c0_24] : memref<2x8x32xbf16, #tpu.memory_space<vmem>>, vector<1x8x32xbf16>
    %35 = vector.shape_cast %34 : vector<1x8x32xbf16> to vector<8x32xbf16>
    %cst_25 = arith.constant dense<0.000000e+00> : vector<8x32xf32>
    %36 = tpu.matmul %35, %0, %cst_25 {dimension_numbers = #tpu.dot_dimension_numbers<[1], [0], [0], [1], [0, 0, 1, 1], [], []>} : vector<8x32xbf16>, vector<32x32xbf16>, vector<8x32xf32> -> vector<8x32xf32>
    %cst_26 = arith.constant dense<0.000000e+00> : vector<8x32xf32>
    %37 = tpu.matmul %35, %1, %cst_26 {dimension_numbers = #tpu.dot_dimension_numbers<[1], [0], [0], [1], [0, 0, 1, 1], [], []>} : vector<8x32xbf16>, vector<32x32xbf16>, vector<8x32xf32> -> vector<8x32xf32>
    %cst_27 = arith.constant dense<0.000000e+00> : vector<8x32xf32>
    %38 = tpu.matmul %35, %2, %cst_27 {dimension_numbers = #tpu.dot_dimension_numbers<[1], [0], [0], [1], [0, 0, 1, 1], [], []>} : vector<8x32xbf16>, vector<32x32xbf16>, vector<8x32xf32> -> vector<8x32xf32>
    %39 = arith.truncf %36 : vector<8x32xf32> to vector<8x32xbf16>
    %40 = arith.truncf %37 : vector<8x32xf32> to vector<8x32xbf16>
    %cst_28 = arith.constant dense<0.000000e+00> : vector<8x8xf32>
    %41 = tpu.matmul %39, %40, %cst_28 {dimension_numbers = #tpu.dot_dimension_numbers<[1], [1], [0], [0], [0, 0, 1, 0], [], []>} : vector<8x32xbf16>, vector<8x32xbf16>, vector<8x8xf32> -> vector<8x8xf32>
    %cst_29 = arith.constant 0.353553385 : f32
    %42 = vector.broadcast %cst_29 : f32 to vector<8x8xf32>
    %43 = arith.mulf %41, %42 : vector<8x8xf32>
    %cst_30 = arith.constant dense<0xFF800000> : vector<8xf32>
    %44 = vector.multi_reduction <maximumf>, %43, %cst_30 [1] : vector<8x8xf32> to vector<8xf32>
    %45 = vector.shape_cast %44 : vector<8xf32> to vector<8x1xf32>
    %46 = vector.broadcast %45 : vector<8x1xf32> to vector<8x8xf32>
    %47 = arith.subf %43, %46 : vector<8x8xf32>
    %48 = math.exp %47 : vector<8x8xf32>
    %cst_31 = arith.constant dense<0.000000e+00> : vector<8xf32>
    %49 = vector.multi_reduction <add>, %48, %cst_31 [1] : vector<8x8xf32> to vector<8xf32>
    %50 = vector.shape_cast %49 : vector<8xf32> to vector<8x1xf32>
    %51 = tpu.reciprocal %50 {approx = true} : vector<8x1xf32> -> vector<8x1xf32>
    %52 = vector.broadcast %51 : vector<8x1xf32> to vector<8x8xf32>
    %53 = arith.mulf %48, %52 : vector<8x8xf32>
    %54 = arith.truncf %53 : vector<8x8xf32> to vector<8x8xbf16>
    %55 = arith.truncf %38 : vector<8x32xf32> to vector<8x32xbf16>
    %cst_32 = arith.constant dense<0.000000e+00> : vector<8x32xf32>
    %56 = tpu.matmul %54, %55, %cst_32 {dimension_numbers = #tpu.dot_dimension_numbers<[1], [0], [0], [1], [0, 0, 1, 1], [], []>} : vector<8x8xbf16>, vector<8x32xbf16>, vector<8x32xf32> -> vector<8x32xf32>
    %57 = arith.truncf %56 : vector<8x32xf32> to vector<8x32xbf16>
    %cst_33 = arith.constant dense<0.000000e+00> : vector<8x32xf32>
    %58 = tpu.matmul %57, %3, %cst_33 {dimension_numbers = #tpu.dot_dimension_numbers<[1], [0], [0], [1], [0, 0, 1, 1], [], []>} : vector<8x32xbf16>, vector<32x32xbf16>, vector<8x32xf32> -> vector<8x32xf32>
    %59 = arith.truncf %58 : vector<8x32xf32> to vector<8x32xbf16>
    %c0_34 = arith.constant 0 : index
    %c0_35 = arith.constant 0 : index
    %60 = vector.load %arg6[%c0_34, %c0_35] : memref<32x32xbf16, #tpu.memory_space<vmem>>, vector<32x32xbf16>
    %cst_36 = arith.constant dense<0.000000e+00> : vector<8x32xf32>
    %61 = tpu.matmul %59, %60, %cst_36 {dimension_numbers = #tpu.dot_dimension_numbers<[1], [0], [0], [1], [0, 0, 1, 1], [], []>} : vector<8x32xbf16>, vector<32x32xbf16>, vector<8x32xf32> -> vector<8x32xf32>
    %62 = arith.truncf %61 : vector<8x32xf32> to vector<8x32xbf16>
    %c0_37 = arith.constant 0 : index
    %c0_38 = arith.constant 0 : index
    %63 = vector.load %arg8[%c0_37, %c0_38] : memref<8x32xbf16, #tpu.memory_space<vmem>>, vector<8x32xbf16>
    tpu.vector_store %arg8[%c0_37, %c0_38], %62 {strides = array<i32>} : memref<8x32xbf16, #tpu.memory_space<vmem>>, vector<8x32xbf16>,
    return
  }
}

</mosaic_0001>

<llo_original>
// kernel: tpu_custom_call.1
$region0: #{tpu_custom_call.1}
  #allocation0 [shape = 'u32[]', space=smem, size = 0x4, offset = 0x4, fixed_abs, tag = 'smem constant byte address 0x4 - core index']
  #allocation1 [shape = 'u32[144,128]{1,0:T(1,128)}', space=vmem, size = 0x12000, scoped, tag = 'internal scratch']
  %s0 = inlined_call_operand.hbm [shape: bf16[2,8,32], index: 0, kind: input, shape index: {}]
  %s1 = inlined_call_operand.hbm [shape: bf16[32,32], index: 1, kind: input, shape index: {}]
  %s2 = inlined_call_operand.hbm [shape: bf16[32,32], index: 2, kind: input, shape index: {}]
  %s3 = inlined_call_operand.hbm [shape: bf16[32,32], index: 3, kind: input, shape index: {}]
  %s4 = inlined_call_operand.hbm [shape: bf16[32,32], index: 4, kind: input, shape index: {}]
  %s5 = inlined_call_operand.vmem [shape: bf16[32,32], index: 5, kind: input, shape index: {}]
  %s6 = inlined_call_operand.hbm [shape: bf16[32,32], index: 6, kind: input, shape index: {}]
  %s7 = inlined_call_operand.hbm [shape: bf16[8,32], index: 7, kind: output, shape index: {0}]
  %s8 = inlined_call_operand.hbm [shape: bf16[8,32], index: 8, kind: output, shape index: {1}]
  %9 = xla_tuple %s7, %s8
  %s10 = sld [smem:[#allocation0]]
  $region70: #{tpu_custom_call.1} parent=0
    _
  %s12 = ssub.s32 1, %s10
  %s13 = scalar_select 0, %s12, %s10
  $region1: #{tpu_custom_call.1} parent=0
    #allocation2 [shape = 'u8[4096]{0}', space=vmem, size = 0x1000, scoped, tag = 'input window, operand 0, single buffered']
    #allocation3 [shape = 's32[1]{0}', space=sflag, size = 0x4, scoped, tag = 'scoped memory for tpu_custom_call.1']
    #allocation4 [shape = 's32[1]{0}', space=sflag, size = 0x4, scoped, tag = 'scoped memory for tpu_custom_call.1']
    #allocation5 [shape = 'u8[8192]{0}', space=vmem, size = 0x2000, scoped, tag = 'input window, operand 1, single buffered']
    #allocation6 [shape = 's32[1]{0}', space=sflag, size = 0x4, scoped, tag = 'scoped memory for tpu_custom_call.1']
    #allocation7 [shape = 'u8[8192]{0}', space=vmem, size = 0x2000, scoped, tag = 'input window, operand 2, single buffered']
    #allocation8 [shape = 'u8[8192]{0}', space=vmem, size = 0x2000, scoped, tag = 'input window, operand 3, single buffered']
    #allocation9 [shape = 's32[1]{0}', space=sflag, size = 0x4, scoped, tag = 'scoped memory for tpu_custom_call.1']
    #allocation10 [shape = 'u8[8192]{0}', space=vmem, size = 0x2000, scoped, tag = 'input window, operand 4, single buffered']
    #allocation11 [shape = 'u8[8192]{0}', space=vmem, size = 0x2000, scoped, tag = 'input window, operand 6, single buffered']
    #allocation12 [shape = 's32[1]{0}', space=sflag, size = 0x4, scoped, tag = 'scoped memory for tpu_custom_call.1']
    #allocation13 [shape = 'u8[2048]{0}', space=vmem, size = 0x800, scoped, tag = 'output window, operand 0, single buffered']
    #allocation14 [shape = 'u8[2048]{0}', space=vmem, size = 0x800, scoped, tag = 'output window, operand 1, single buffered']
    #allocation15 [shape = 's32[1]{0}', space=sflag, size = 0x4, scoped, tag = 'scoped memory for tpu_custom_call.1']
    %14 = vsyncpa [#allocation3], 0
    %15 = vsyncpa [#allocation6], 0
    %16 = vsyncpa [#allocation9], 0
    %17 = vsyncpa [#allocation12], 0
    %18 = vsyncpa [#allocation4], 0
    %19 = vsyncpa [#allocation15], 0
    // Predicated region
    $region2: #{tpu_custom_call.1} parent=1 // pred_check
      _
    $region3: #{tpu_custom_call.1} parent=1 // pred_check_branch
      %21 = sbr.rel (0) target = $region5
    $region4: #{tpu_custom_call.1} parent=1 // pred_region
      %s23 = ssub.s32 128, 128
      %24 = vsyncadd [#allocation3], %s23
      %s25 = sshll.u32 [#allocation2], 4
      %s26 = int_to_ptr.vmem [resolvable:$true] %s25
      %31 = dma.hbm_to_vmem [thread:$0]  %s0, 128, %s26, [#allocation3], 64, 64, 4
    $region5: #{tpu_custom_call.1} parent=1 // pred_fallthru
      _
    // Predicated region
    $region6: #{tpu_custom_call.1} parent=1 // pred_check
      _
    $region7: #{tpu_custom_call.1} parent=1 // pred_check_branch
      %33 = sbr.rel (0) target = $region9
    $region8: #{tpu_custom_call.1} parent=1 // pred_region
      %s35 = ssub.s32 256, 256
      %36 = vsyncadd [#allocation6], %s35
      %s37 = sshll.u32 [#allocation5], 4
      %s38 = int_to_ptr.vmem [resolvable:$true] %s37
      %43 = dma.hbm_to_vmem [thread:$0]  %s1, 256, %s38, [#allocation6], 64, 64, 4
    $region9: #{tpu_custom_call.1} parent=1 // pred_fallthru
      _
    // Predicated region
    $region10: #{tpu_custom_call.1} parent=1 // pred_check
      _
    $region11: #{tpu_custom_call.1} parent=1 // pred_check_branch
      %45 = sbr.rel (0) target = $region13
    $region12: #{tpu_custom_call.1} parent=1 // pred_region
      %s47 = ssub.s32 256, 256
      %48 = vsyncadd [#allocation6], %s47
      %s49 = sshll.u32 [#allocation7], 4
      %s50 = int_to_ptr.vmem [resolvable:$true] %s49
      %55 = dma.hbm_to_vmem [thread:$0]  %s2, 256, %s50, [#allocation6], 64, 64, 4
    $region13: #{tpu_custom_call.1} parent=1 // pred_fallthru
      _
    // Predicated region
    $region14: #{tpu_custom_call.1} parent=1 // pred_check
      _
    $region15: #{tpu_custom_call.1} parent=1 // pred_check_branch
      %57 = sbr.rel (0) target = $region17
    $region16: #{tpu_custom_call.1} parent=1 // pred_region
      %s59 = ssub.s32 256, 256
      %60 = vsyncadd [#allocation9], %s59
      %s61 = sshll.u32 [#allocation8], 4
      %s62 = int_to_ptr.vmem [resolvable:$true] %s61
      %67 = dma.hbm_to_vmem [thread:$0]  %s3, 256, %s62, [#allocation9], 64, 64, 4
    $region17: #{tpu_custom_call.1} parent=1 // pred_fallthru
      _
    // Predicated region
    $region18: #{tpu_custom_call.1} parent=1 // pred_check
      _
    $region19: #{tpu_custom_call.1} parent=1 // pred_check_branch
      %69 = sbr.rel (0) target = $region21
    $region20: #{tpu_custom_call.1} parent=1 // pred_region
      %s71 = ssub.s32 256, 256
      %72 = vsyncadd [#allocation9], %s71
      %s73 = sshll.u32 [#allocation10], 4
      %s74 = int_to_ptr.vmem [resolvable:$true] %s73
      %79 = dma.hbm_to_vmem [thread:$0]  %s4, 256, %s74, [#allocation9], 64, 64, 4
    $region21: #{tpu_custom_call.1} parent=1 // pred_fallthru
      _
    // Predicated region
    $region22: #{tpu_custom_call.1} parent=1 // pred_check
      _
    $region23: #{tpu_custom_call.1} parent=1 // pred_check_branch
      %81 = sbr.rel (0) target = $region25
    $region24: #{tpu_custom_call.1} parent=1 // pred_region
      _
    $region25: #{tpu_custom_call.1} parent=1 // pred_fallthru
      _
    // Predicated region
    $region26: #{tpu_custom_call.1} parent=1 // pred_check
      _
    $region27: #{tpu_custom_call.1} parent=1 // pred_check_branch
      %83 = sbr.rel (0) target = $region29
    $region28: #{tpu_custom_call.1} parent=1 // pred_region
      %s85 = ssub.s32 256, 256
      %86 = vsyncadd [#allocation12], %s85
      %s87 = sshll.u32 [#allocation11], 4
      %s88 = int_to_ptr.vmem [resolvable:$true] %s87
      %93 = dma.hbm_to_vmem [thread:$0]  %s6, 256, %s88, [#allocation12], 64, 64, 4
    $region29: #{tpu_custom_call.1} parent=1 // pred_fallthru
      _
    // Predicated region
    $region30: #{tpu_custom_call.1} parent=1 // pred_check
      _
    $region31: #{tpu_custom_call.1} parent=1 // pred_check_branch
      %95 = sbr.rel (0) target = $region33
    $region32: #{tpu_custom_call.1} parent=1 // pred_region
      %96 = dma.done [#allocation3], 128
    $region33: #{tpu_custom_call.1} parent=1 // pred_fallthru
      _
    // Predicated region
    $region34: #{tpu_custom_call.1} parent=1 // pred_check
      _
    $region35: #{tpu_custom_call.1} parent=1 // pred_check_branch
      %98 = sbr.rel (0) target = $region37
    $region36: #{tpu_custom_call.1} parent=1 // pred_region
      %99 = dma.done [#allocation6], 256
    $region37: #{tpu_custom_call.1} parent=1 // pred_fallthru
      _
    // Predicated region
    $region38: #{tpu_custom_call.1} parent=1 // pred_check
      _
    $region39: #{tpu_custom_call.1} parent=1 // pred_check_branch
      %101 = sbr.rel (0) target = $region41
    $region40: #{tpu_custom_call.1} parent=1 // pred_region
      %102 = dma.done [#allocation6], 256
    $region41: #{tpu_custom_call.1} parent=1 // pred_fallthru
      _
    // Predicated region
    $region42: #{tpu_custom_call.1} parent=1 // pred_check
      _
    $region43: #{tpu_custom_call.1} parent=1 // pred_check_branch
      %104 = sbr.rel (0) target = $region45
    $region44: #{tpu_custom_call.1} parent=1 // pred_region
      %105 = dma.done [#allocation9], 256
    $region45: #{tpu_custom_call.1} parent=1 // pred_fallthru
      _
    // Predicated region
    $region46: #{tpu_custom_call.1} parent=1 // pred_check
      _
    $region47: #{tpu_custom_call.1} parent=1 // pred_check_branch
      %107 = sbr.rel (0) target = $region49
    $region48: #{tpu_custom_call.1} parent=1 // pred_region
      %108 = dma.done [#allocation9], 256
    $region49: #{tpu_custom_call.1} parent=1 // pred_fallthru
      _
    // Predicated region
    $region50: #{tpu_custom_call.1} parent=1 // pred_check
      _
    $region51: #{tpu_custom_call.1} parent=1 // pred_check_branch
      %110 = sbr.rel (0) target = $region53
    $region52: #{tpu_custom_call.1} parent=1 // pred_region
      %111 = dma.done [#allocation12], 256
    $region53: #{tpu_custom_call.1} parent=1 // pred_fallthru
      _
    %v113 = vld [vmem:[#allocation5] sm:$0xf]
    %v114 = vld [vmem:[#allocation5 + $0x4] sm:$0xf]
    %v115 = vld [vmem:[#allocation5 + $0x8] sm:$0xf]
    %v116 = vld [vmem:[#allocation5 + $0xc] sm:$0xf]
    %v117 = vld [vmem:[#allocation7] sm:$0xf]
    %v118 = vld [vmem:[#allocation7 + $0x4] sm:$0xf]
    %v119 = vld [vmem:[#allocation7 + $0x8] sm:$0xf]
    %v120 = vld [vmem:[#allocation7 + $0xc] sm:$0xf]
    %v121 = vld [vmem:[#allocation8] sm:$0xf]
    %v122 = vld [vmem:[#allocation8 + $0x4] sm:$0xf]
    %v123 = vld [vmem:[#allocation8 + $0x8] sm:$0xf]
    %v124 = vld [vmem:[#allocation8 + $0xc] sm:$0xf]
    %v125 = vld [vmem:[#allocation10] sm:$0xf]
    %v126 = vld [vmem:[#allocation10 + $0x4] sm:$0xf]
    %v127 = vld [vmem:[#allocation10 + $0x8] sm:$0xf]
    %v128 = vld [vmem:[#allocation10 + $0xc] sm:$0xf]
    %v129 = vld [vmem:[#allocation2] sm:$0xf]
    %v134 = vunpack.c.l.b16 %v113
    %v135 = vunpack.c.l.b16 %v114
    %v136 = vunpack.c.l.b16 %v115
    %v137 = vunpack.c.l.b16 %v116
    %v138 = vpack.c.b16 %v135, %v134
    %v139 = vpack.c.b16 %v137, %v136
    %vm142 = vcmask 261120
    %v144 = vsel %vm142, %v129, 0
    %146 = vmatprep.subr.bf16.mxu0 0
    %147 = vmatpush1.bf16.msra.mxu0 %v138
    %148 = vmatprep.subr.bf16.mxu0 0
    %149 = vmatpush1.bf16.msra.mxu0 %v139
    %150 = vmatprep.subr.bf16.mxu0 0
    %151 = vmatpush1.bf16.msra.mxu0 0
    %152 = vmatprep.subr.bf16.mxu0 0
    %153 = vmatpush1.bf16.msra.mxu0 0
    %154 = vmatprep.subr.bf16.mxu0 0
    %155 = vmatpush1.bf16.msra.mxu0 0
    %156 = vmatprep.subr.bf16.mxu0 0
    %157 = vmatpush1.bf16.msra.mxu0 0
    %158 = vmatprep.subr.bf16.mxu0 0
    %159 = vmatpush1.bf16.msra.mxu0 0
    %160 = vmatprep.subr.bf16.mxu0 0
    %161 = vmatpush1.bf16.msra.mxu0 0
    %162 = vmatprep.subr.bf16.mxu0 0
    %163 = vmatpush1.bf16.msra.mxu0 0
    %164 = vmatprep.subr.bf16.mxu0 0
    %165 = vmatpush1.bf16.msra.mxu0 0
    %166 = vmatprep.subr.bf16.mxu0 0
    %167 = vmatpush1.bf16.msra.mxu0 0
    %168 = vmatprep.subr.bf16.mxu0 0
    %169 = vmatpush1.bf16.msra.mxu0 0
    %170 = vmatprep.subr.bf16.mxu0 0
    %171 = vmatpush1.bf16.msra.mxu0 0
    %172 = vmatprep.subr.bf16.mxu0 0
    %173 = vmatpush1.bf16.msra.mxu0 0
    %174 = vmatprep.subr.bf16.mxu0 0
    %175 = vmatpush1.bf16.msra.mxu0 0
    %176 = vmatprep.subr.bf16.mxu0 0
    %177 = vmatpush1.bf16.msra.mxu0 0
    %178 = vmatprep.mubr.bf16.mxu0 0
    %179 = vmatmul.mubr.bf16.gmra.mrb[0].mxu0 %v144
    %v180 = vpop.f32.mrb[0].mxu0
    %v181 = vadd.f32 0.0, %v180
    %v182 = vpop.f32.mrb[0].mxu0
    %v183 = vpop.f32.mrb[0].mxu0
    %v184 = vpop.f32.mrb[0].mxu0
    %185 = vdwg.mxu0
    %v190 = vunpack.c.l.b16 %v117
    %v191 = vunpack.c.l.b16 %v118
    %v192 = vunpack.c.l.b16 %v119
    %v193 = vunpack.c.l.b16 %v120
    %v194 = vpack.c.b16 %v191, %v190
    %v195 = vpack.c.b16 %v193, %v192
    %198 = vmatprep.subr.bf16.mxu0 0
    %199 = vmatpush1.bf16.msra.mxu0 %v194
    %200 = vmatprep.subr.bf16.mxu0 0
    %201 = vmatpush1.bf16.msra.mxu0 %v195
    %202 = vmatprep.subr.bf16.mxu0 0
    %203 = vmatpush1.bf16.msra.mxu0 0
    %204 = vmatprep.subr.bf16.mxu0 0
    %205 = vmatpush1.bf16.msra.mxu0 0
    %206 = vmatprep.subr.bf16.mxu0 0
    %207 = vmatpush1.bf16.msra.mxu0 0
    %208 = vmatprep.subr.bf16.mxu0 0
    %209 = vmatpush1.bf16.msra.mxu0 0
    %210 = vmatprep.subr.bf16.mxu0 0
    %211 = vmatpush1.bf16.msra.mxu0 0
    %212 = vmatprep.subr.bf16.mxu0 0
    %213 = vmatpush1.bf16.msra.mxu0 0
    %214 = vmatprep.subr.bf16.mxu0 0
    %215 = vmatpush1.bf16.msra.mxu0 0
    %216 = vmatprep.subr.bf16.mxu0 0
    %217 = vmatpush1.bf16.msra.mxu0 0
    %218 = vmatprep.subr.bf16.mxu0 0
    %219 = vmatpush1.bf16.msra.mxu0 0
    %220 = vmatprep.subr.bf16.mxu0 0
    %221 = vmatpush1.bf16.msra.mxu0 0
    %222 = vmatprep.subr.bf16.mxu0 0
    %223 = vmatpush1.bf16.msra.mxu0 0
    %224 = vmatprep.subr.bf16.mxu0 0
    %225 = vmatpush1.bf16.msra.mxu0 0
    %226 = vmatprep.subr.bf16.mxu0 0
    %227 = vmatpush1.bf16.msra.mxu0 0
    %228 = vmatprep.subr.bf16.mxu0 0
    %229 = vmatpush1.bf16.msra.mxu0 0
    %230 = vmatprep.mubr.bf16.mxu0 0
    %231 = vmatmul.mubr.bf16.gmra.mrb[0].mxu0 %v144
    %v232 = vpop.f32.mrb[0].mxu0
    %v233 = vadd.f32 0.0, %v232
    %v234 = vpop.f32.mrb[0].mxu0
    %v235 = vpop.f32.mrb[0].mxu0
    %v236 = vpop.f32.mrb[0].mxu0
    %237 = vdwg.mxu0
    %v242 = vunpack.c.l.b16 %v121
    %v243 = vunpack.c.l.b16 %v122
    %v244 = vunpack.c.l.b16 %v123
    %v245 = vunpack.c.l.b16 %v124
    %v246 = vpack.c.b16 %v243, %v242
    %v247 = vpack.c.b16 %v245, %v244
    %250 = vmatprep.subr.bf16.mxu0 0
    %251 = vmatpush1.bf16.msra.mxu0 %v246
    %252 = vmatprep.subr.bf16.mxu0 0
    %253 = vmatpush1.bf16.msra.mxu0 %v247
    %254 = vmatprep.subr.bf16.mxu0 0
    %255 = vmatpush1.bf16.msra.mxu0 0
    %256 = vmatprep.subr.bf16.mxu0 0
    %257 = vmatpush1.bf16.msra.mxu0 0
    %258 = vmatprep.subr.bf16.mxu0 0
    %259 = vmatpush1.bf16.msra.mxu0 0
    %260 = vmatprep.subr.bf16.mxu0 0
    %261 = vmatpush1.bf16.msra.mxu0 0
    %262 = vmatprep.subr.bf16.mxu0 0
    %263 = vmatpush1.bf16.msra.mxu0 0
    %264 = vmatprep.subr.bf16.mxu0 0
    %265 = vmatpush1.bf16.msra.mxu0 0
    %266 = vmatprep.subr.bf16.mxu0 0
    %267 = vmatpush1.bf16.msra.mxu0 0
    %268 = vmatprep.subr.bf16.mxu0 0
    %269 = vmatpush1.bf16.msra.mxu0 0
    %270 = vmatprep.subr.bf16.mxu0 0
    %271 = vmatpush1.bf16.msra.mxu0 0
    %272 = vmatprep.subr.bf16.mxu0 0
    %273 = vmatpush1.bf16.msra.mxu0 0
    %274 = vmatprep.subr.bf16.mxu0 0
    %275 = vmatpush1.bf16.msra.mxu0 0
    %276 = vmatprep.subr.bf16.mxu0 0
    %277 = vmatpush1.bf16.msra.mxu0 0
    %278 = vmatprep.subr.bf16.mxu0 0
    %279 = vmatpush1.bf16.msra.mxu0 0
    %280 = vmatprep.subr.bf16.mxu0 0
    %281 = vmatpush1.bf16.msra.mxu0 0
    %282 = vmatprep.mubr.bf16.mxu0 0
    %283 = vmatmul.mubr.bf16.gmra.mrb[0].mxu0 %v144
    %v284 = vpop.f32.mrb[0].mxu0
    %v285 = vadd.f32 0.0, %v284
    %v286 = vpop.f32.mrb[0].mxu0
    %v287 = vpop.f32.mrb[0].mxu0
    %v288 = vpop.f32.mrb[0].mxu0
    %289 = vdwg.mxu0
    %v290 = vpack.c.bf16 %v181, %v181
    %v291 = vpack.c.bf16 %v233, %v233
    %v293 = vsel %vm142, %v290, 0
    %v296 = vsel %vm142, %v291, 0
    %298 = vmatprep.subr.bf16.mxu0 0
    %299 = vmatpush1.bf16.xpose.msra.mxu0 %v296
    %300 = vmatprep.subr.bf16.mxu0 0
    %301 = vmatpush1.bf16.xpose.msra.mxu0 0
    %302 = vmatprep.subr.bf16.mxu0 0
    %303 = vmatpush1.bf16.xpose.msra.mxu0 0
    %304 = vmatprep.subr.bf16.mxu0 0
    %305 = vmatpush1.bf16.xpose.msra.mxu0 0
    %306 = vmatprep.subr.bf16.mxu0 0
    %307 = vmatpush1.bf16.xpose.msra.mxu0 0
    %308 = vmatprep.subr.bf16.mxu0 0
    %309 = vmatpush1.bf16.xpose.msra.mxu0 0
    %310 = vmatprep.subr.bf16.mxu0 0
    %311 = vmatpush1.bf16.xpose.msra.mxu0 0
    %312 = vmatprep.subr.bf16.mxu0 0
    %313 = vmatpush1.bf16.xpose.msra.mxu0 0
    %314 = vmatprep.subr.bf16.mxu0 0
    %315 = vmatpush1.bf16.xpose.msra.mxu0 0
    %316 = vmatprep.subr.bf16.mxu0 0
    %317 = vmatpush1.bf16.xpose.msra.mxu0 0
    %318 = vmatprep.subr.bf16.mxu0 0
    %319 = vmatpush1.bf16.xpose.msra.mxu0 0
    %320 = vmatprep.subr.bf16.mxu0 0
    %321 = vmatpush1.bf16.xpose.msra.mxu0 0
    %322 = vmatprep.subr.bf16.mxu0 0
    %323 = vmatpush1.bf16.xpose.msra.mxu0 0
    %324 = vmatprep.subr.bf16.mxu0 0
    %325 = vmatpush1.bf16.xpose.msra.mxu0 0
    %326 = vmatprep.subr.bf16.mxu0 0
    %327 = vmatpush1.bf16.xpose.msra.mxu0 0
    %328 = vmatprep.subr.bf16.mxu0 0
    %329 = vmatpush1.bf16.xpose.msra.mxu0 0
    %330 = vmatprep.mubr.bf16.mxu0 0
    %331 = vmatmul.mubr.bf16.gmra.mrb[0].mxu0 %v293
    %v332 = vpop.f32.mrb[0].mxu0
    %v333 = vadd.f32 0.0, %v332
    %v334 = vpop.f32.mrb[0].mxu0
    %v335 = vpop.f32.mrb[0].mxu0
    %v336 = vpop.f32.mrb[0].mxu0
    %337 = vdwg.mxu0
    %v338 = vmul.f32 %v333, 0.35355338
    %vm339 = vcmask 64512
    %v340 = vsel %vm339, %v338, -inf
    %341 = vmax.xlane.f32.xlu0 %v340
    %v342 = vpop.xlane.xlu0 %341
    %v343 = vsub.f32 %v338, %v342
    %v344 = vmul.f32 %v343, 1.442695
    %v345 = vpow.pop %v344
    %v346 = vsel %vm339, %v345, 0.0
    %347 = vadd.xlane.f32.xlu0 %v346
    %v348 = vpop.xlane.xlu0 %347
    %v349 = vrcp.pop %v348
    %v350 = vmul.f32 %v345, %v349
    %v351 = vpack.c.bf16 %v350, %v350
    %v352 = vpack.c.bf16 %v285, %v285
    %v354 = vsel %vm339, %v351, 0
    %vm356 = vcmask 1043456
    %v358 = vsel %vm356, %v352, 0
    %360 = vmatprep.subr.bf16.mxu0 0
    %361 = vmatpush1.bf16.msra.mxu0 %v358
    %362 = vmatprep.subr.bf16.mxu0 0
    %363 = vmatpush1.bf16.msra.mxu0 0
    %364 = vmatprep.subr.bf16.mxu0 0
    %365 = vmatpush1.bf16.msra.mxu0 0
    %366 = vmatprep.subr.bf16.mxu0 0
    %367 = vmatpush1.bf16.msra.mxu0 0
    %368 = vmatprep.subr.bf16.mxu0 0
    %369 = vmatpush1.bf16.msra.mxu0 0
    %370 = vmatprep.subr.bf16.mxu0 0
    %371 = vmatpush1.bf16.msra.mxu0 0
    %372 = vmatprep.subr.bf16.mxu0 0
    %373 = vmatpush1.bf16.msra.mxu0 0
    %374 = vmatprep.subr.bf16.mxu0 0
    %375 = vmatpush1.bf16.msra.mxu0 0
    %376 = vmatprep.subr.bf16.mxu0 0
    %377 = vmatpush1.bf16.msra.mxu0 0
    %378 = vmatprep.subr.bf16.mxu0 0
    %379 = vmatpush1.bf16.msra.mxu0 0
    %380 = vmatprep.subr.bf16.mxu0 0
    %381 = vmatpush1.bf16.msra.mxu0 0
    %382 = vmatprep.subr.bf16.mxu0 0
    %383 = vmatpush1.bf16.msra.mxu0 0
    %384 = vmatprep.subr.bf16.mxu0 0
    %385 = vmatpush1.bf16.msra.mxu0 0
    %386 = vmatprep.subr.bf16.mxu0 0
    %387 = vmatpush1.bf16.msra.mxu0 0
    %388 = vmatprep.subr.bf16.mxu0 0
    %389 = vmatpush1.bf16.msra.mxu0 0
    %390 = vmatprep.subr.bf16.mxu0 0
    %391 = vmatpush1.bf16.msra.mxu0 0
    %392 = vmatprep.mubr.bf16.mxu0 0
    %393 = vmatmul.mubr.bf16.gmra.mrb[0].mxu0 %v354
    %v394 = vpop.f32.mrb[0].mxu0
    %v395 = vadd.f32 0.0, %v394
    %v396 = vpop.f32.mrb[0].mxu0
    %v397 = vpop.f32.mrb[0].mxu0
    %v398 = vpop.f32.mrb[0].mxu0
    %399 = vdwg.mxu0
    %v400 = vpack.c.bf16 %v395, %v395
    %v405 = vunpack.c.l.b16 %v125
    %v406 = vunpack.c.l.b16 %v126
    %v407 = vunpack.c.l.b16 %v127
    %v408 = vunpack.c.l.b16 %v128
    %v409 = vpack.c.b16 %v406, %v405
    %v410 = vpack.c.b16 %v408, %v407
    %v414 = vsel %vm142, %v400, 0
    %416 = vmatprep.subr.bf16.mxu0 0
    %417 = vmatpush1.bf16.msra.mxu0 %v409
    %418 = vmatprep.subr.bf16.mxu0 0
    %419 = vmatpush1.bf16.msra.mxu0 %v410
    %420 = vmatprep.subr.bf16.mxu0 0
    %421 = vmatpush1.bf16.msra.mxu0 0
    %422 = vmatprep.subr.bf16.mxu0 0
    %423 = vmatpush1.bf16.msra.mxu0 0
    %424 = vmatprep.subr.bf16.mxu0 0
    %425 = vmatpush1.bf16.msra.mxu0 0
    %426 = vmatprep.subr.bf16.mxu0 0
    %427 = vmatpush1.bf16.msra.mxu0 0
    %428 = vmatprep.subr.bf16.mxu0 0
    %429 = vmatpush1.bf16.msra.mxu0 0
    %430 = vmatprep.subr.bf16.mxu0 0
    %431 = vmatpush1.bf16.msra.mxu0 0
    %432 = vmatprep.subr.bf16.mxu0 0
    %433 = vmatpush1.bf16.msra.mxu0 0
    %434 = vmatprep.subr.bf16.mxu0 0
    %435 = vmatpush1.bf16.msra.mxu0 0
    %436 = vmatprep.subr.bf16.mxu0 0
    %437 = vmatpush1.bf16.msra.mxu0 0
    %438 = vmatprep.subr.bf16.mxu0 0
    %439 = vmatpush1.bf16.msra.mxu0 0
    %440 = vmatprep.subr.bf16.mxu0 0
    %441 = vmatpush1.bf16.msra.mxu0 0
    %442 = vmatprep.subr.bf16.mxu0 0
    %443 = vmatpush1.bf16.msra.mxu0 0
    %444 = vmatprep.subr.bf16.mxu0 0
    %445 = vmatpush1.bf16.msra.mxu0 0
    %446 = vmatprep.subr.bf16.mxu0 0
    %447 = vmatpush1.bf16.msra.mxu0 0
    %448 = vmatprep.mubr.bf16.mxu0 0
    %449 = vmatmul.mubr.bf16.gmra.mrb[0].mxu0 %v414
    %v450 = vpop.f32.mrb[0].mxu0
    %v451 = vadd.f32 0.0, %v450
    %v452 = vpop.f32.mrb[0].mxu0
    %v453 = vpop.f32.mrb[0].mxu0
    %v454 = vpop.f32.mrb[0].mxu0
    %455 = vdwg.mxu0
    %v456 = vpack.c.bf16 %v451, %v451
    %v457 = vld [vmem:[%s5] sm:$0xf]
    %v458 = vld [vmem:[%s5 + $0x4] sm:$0xf]
    %v459 = vld [vmem:[%s5 + $0x8] sm:$0xf]
    %v460 = vld [vmem:[%s5 + $0xc] sm:$0xf]
    %v465 = vunpack.c.l.b16 %v457
    %v466 = vunpack.c.l.b16 %v458
    %v467 = vunpack.c.l.b16 %v459
    %v468 = vunpack.c.l.b16 %v460
    %v469 = vpack.c.b16 %v466, %v465
    %v470 = vpack.c.b16 %v468, %v467
    %v474 = vsel %vm142, %v456, 0
    %476 = vmatprep.subr.bf16.mxu0 0
    %477 = vmatpush1.bf16.msra.mxu0 %v469
    %478 = vmatprep.subr.bf16.mxu0 0
    %479 = vmatpush1.bf16.msra.mxu0 %v470
    %480 = vmatprep.subr.bf16.mxu0 0
    %481 = vmatpush1.bf16.msra.mxu0 0
    %482 = vmatprep.subr.bf16.mxu0 0
    %483 = vmatpush1.bf16.msra.mxu0 0
    %484 = vmatprep.subr.bf16.mxu0 0
    %485 = vmatpush1.bf16.msra.mxu0 0
    %486 = vmatprep.subr.bf16.mxu0 0
    %487 = vmatpush1.bf16.msra.mxu0 0
    %488 = vmatprep.subr.bf16.mxu0 0
    %489 = vmatpush1.bf16.msra.mxu0 0
    %490 = vmatprep.subr.bf16.mxu0 0
    %491 = vmatpush1.bf16.msra.mxu0 0
    %492 = vmatprep.subr.bf16.mxu0 0
    %493 = vmatpush1.bf16.msra.mxu0 0
    %494 = vmatprep.subr.bf16.mxu0 0
    %495 = vmatpush1.bf16.msra.mxu0 0
    %496 = vmatprep.subr.bf16.mxu0 0
    %497 = vmatpush1.bf16.msra.mxu0 0
    %498 = vmatprep.subr.bf16.mxu0 0
    %499 = vmatpush1.bf16.msra.mxu0 0
    %500 = vmatprep.subr.bf16.mxu0 0
    %501 = vmatpush1.bf16.msra.mxu0 0
    %502 = vmatprep.subr.bf16.mxu0 0
    %503 = vmatpush1.bf16.msra.mxu0 0
    %504 = vmatprep.subr.bf16.mxu0 0
    %505 = vmatpush1.bf16.msra.mxu0 0
    %506 = vmatprep.subr.bf16.mxu0 0
    %507 = vmatpush1.bf16.msra.mxu0 0
    %508 = vmatprep.mubr.bf16.mxu0 0
    %509 = vmatmul.mubr.bf16.gmra.mrb[0].mxu0 %v474
    %v510 = vpop.f32.mrb[0].mxu0
    %v511 = vadd.f32 0.0, %v510
    %v512 = vpop.f32.mrb[0].mxu0
    %v513 = vpop.f32.mrb[0].mxu0
    %v514 = vpop.f32.mrb[0].mxu0
    %515 = vdwg.mxu0
    %v516 = vpack.c.bf16 %v511, %v511
    %vm517 = vcmask 257024
    %518 = vst.msk [vmem:[#allocation13] sm:$0xf] %vm517, %v516
    %s519 = scalar_lea.vmem [#allocation2], 4
    %v520 = vld [vmem:[%s519] sm:$0xf]
    %v522 = vsel %vm142, %v520, 0
    %524 = vmatprep.subr.bf16.mxu0 0
    %525 = vmatpush1.bf16.msra.mxu0 %v138
    %526 = vmatprep.subr.bf16.mxu0 0
    %527 = vmatpush1.bf16.msra.mxu0 %v139
    %528 = vmatprep.subr.bf16.mxu0 0
    %529 = vmatpush1.bf16.msra.mxu0 0
    %530 = vmatprep.subr.bf16.mxu0 0
    %531 = vmatpush1.bf16.msra.mxu0 0
    %532 = vmatprep.subr.bf16.mxu0 0
    %533 = vmatpush1.bf16.msra.mxu0 0
    %534 = vmatprep.subr.bf16.mxu0 0
    %535 = vmatpush1.bf16.msra.mxu0 0
    %536 = vmatprep.subr.bf16.mxu0 0
    %537 = vmatpush1.bf16.msra.mxu0 0
    %538 = vmatprep.subr.bf16.mxu0 0
    %539 = vmatpush1.bf16.msra.mxu0 0
    %540 = vmatprep.subr.bf16.mxu0 0
    %541 = vmatpush1.bf16.msra.mxu0 0
    %542 = vmatprep.subr.bf16.mxu0 0
    %543 = vmatpush1.bf16.msra.mxu0 0
    %544 = vmatprep.subr.bf16.mxu0 0
    %545 = vmatpush1.bf16.msra.mxu0 0
    %546 = vmatprep.subr.bf16.mxu0 0
    %547 = vmatpush1.bf16.msra.mxu0 0
    %548 = vmatprep.subr.bf16.mxu0 0
    %549 = vmatpush1.bf16.msra.mxu0 0
    %550 = vmatprep.subr.bf16.mxu0 0
    %551 = vmatpush1.bf16.msra.mxu0 0
    %552 = vmatprep.subr.bf16.mxu0 0
    %553 = vmatpush1.bf16.msra.mxu0 0
    %554 = vmatprep.subr.bf16.mxu0 0
    %555 = vmatpush1.bf16.msra.mxu0 0
    %556 = vmatprep.mubr.bf16.mxu0 0
    %557 = vmatmul.mubr.bf16.gmra.mrb[0].mxu0 %v522
    %v558 = vpop.f32.mrb[0].mxu0
    %v559 = vadd.f32 0.0, %v558
    %v560 = vpop.f32.mrb[0].mxu0
    %v561 = vpop.f32.mrb[0].mxu0
    %v562 = vpop.f32.mrb[0].mxu0
    %563 = vdwg.mxu0
    %564 = vmatprep.subr.bf16.mxu0 0
    %565 = vmatpush1.bf16.msra.mxu0 %v194
    %566 = vmatprep.subr.bf16.mxu0 0
    %567 = vmatpush1.bf16.msra.mxu0 %v195
    %568 = vmatprep.subr.bf16.mxu0 0
    %569 = vmatpush1.bf16.msra.mxu0 0
    %570 = vmatprep.subr.bf16.mxu0 0
    %571 = vmatpush1.bf16.msra.mxu0 0
    %572 = vmatprep.subr.bf16.mxu0 0
    %573 = vmatpush1.bf16.msra.mxu0 0
    %574 = vmatprep.subr.bf16.mxu0 0
    %575 = vmatpush1.bf16.msra.mxu0 0
    %576 = vmatprep.subr.bf16.mxu0 0
    %577 = vmatpush1.bf16.msra.mxu0 0
    %578 = vmatprep.subr.bf16.mxu0 0
    %579 = vmatpush1.bf16.msra.mxu0 0
    %580 = vmatprep.subr.bf16.mxu0 0
    %581 = vmatpush1.bf16.msra.mxu0 0
    %582 = vmatprep.subr.bf16.mxu0 0
    %583 = vmatpush1.bf16.msra.mxu0 0
    %584 = vmatprep.subr.bf16.mxu0 0
    %585 = vmatpush1.bf16.msra.mxu0 0
    %586 = vmatprep.subr.bf16.mxu0 0
    %587 = vmatpush1.bf16.msra.mxu0 0
    %588 = vmatprep.subr.bf16.mxu0 0
    %589 = vmatpush1.bf16.msra.mxu0 0
    %590 = vmatprep.subr.bf16.mxu0 0
    %591 = vmatpush1.bf16.msra.mxu0 0
    %592 = vmatprep.subr.bf16.mxu0 0
    %593 = vmatpush1.bf16.msra.mxu0 0
    %594 = vmatprep.subr.bf16.mxu0 0
    %595 = vmatpush1.bf16.msra.mxu0 0
    %596 = vmatprep.mubr.bf16.mxu0 0
    %597 = vmatmul.mubr.bf16.gmra.mrb[0].mxu0 %v522
    %v598 = vpop.f32.mrb[0].mxu0
    %v599 = vadd.f32 0.0, %v598
    %v600 = vpop.f32.mrb[0].mxu0
    %v601 = vpop.f32.mrb[0].mxu0
    %v602 = vpop.f32.mrb[0].mxu0
    %603 = vdwg.mxu0
    %604 = vmatprep.subr.bf16.mxu0 0
    %605 = vmatpush1.bf16.msra.mxu0 %v246
    %606 = vmatprep.subr.bf16.mxu0 0
    %607 = vmatpush1.bf16.msra.mxu0 %v247
    %608 = vmatprep.subr.bf16.mxu0 0
    %609 = vmatpush1.bf16.msra.mxu0 0
    %610 = vmatprep.subr.bf16.mxu0 0
    %611 = vmatpush1.bf16.msra.mxu0 0
    %612 = vmatprep.subr.bf16.mxu0 0
    %613 = vmatpush1.bf16.msra.mxu0 0
    %614 = vmatprep.subr.bf16.mxu0 0
    %615 = vmatpush1.bf16.msra.mxu0 0
    %616 = vmatprep.subr.bf16.mxu0 0
    %617 = vmatpush1.bf16.msra.mxu0 0
    %618 = vmatprep.subr.bf16.mxu0 0
    %619 = vmatpush1.bf16.msra.mxu0 0
    %620 = vmatprep.subr.bf16.mxu0 0
    %621 = vmatpush1.bf16.msra.mxu0 0
    %622 = vmatprep.subr.bf16.mxu0 0
    %623 = vmatpush1.bf16.msra.mxu0 0
    %624 = vmatprep.subr.bf16.mxu0 0
    %625 = vmatpush1.bf16.msra.mxu0 0
    %626 = vmatprep.subr.bf16.mxu0 0
    %627 = vmatpush1.bf16.msra.mxu0 0
    %628 = vmatprep.subr.bf16.mxu0 0
    %629 = vmatpush1.bf16.msra.mxu0 0
    %630 = vmatprep.subr.bf16.mxu0 0
    %631 = vmatpush1.bf16.msra.mxu0 0
    %632 = vmatprep.subr.bf16.mxu0 0
    %633 = vmatpush1.bf16.msra.mxu0 0
    %634 = vmatprep.subr.bf16.mxu0 0
    %635 = vmatpush1.bf16.msra.mxu0 0
    %636 = vmatprep.mubr.bf16.mxu0 0
    %637 = vmatmul.mubr.bf16.gmra.mrb[0].mxu0 %v522
    %v638 = vpop.f32.mrb[0].mxu0
    %v639 = vadd.f32 0.0, %v638
    %v640 = vpop.f32.mrb[0].mxu0
    %v641 = vpop.f32.mrb[0].mxu0
    %v642 = vpop.f32.mrb[0].mxu0
    %643 = vdwg.mxu0
    %v644 = vpack.c.bf16 %v559, %v559
    %v645 = vpack.c.bf16 %v599, %v599
    %v647 = vsel %vm142, %v644, 0
    %v650 = vsel %vm142, %v645, 0
    %652 = vmatprep.subr.bf16.mxu0 0
    %653 = vmatpush1.bf16.xpose.msra.mxu0 %v650
    %654 = vmatprep.subr.bf16.mxu0 0
    %655 = vmatpush1.bf16.xpose.msra.mxu0 0
    %656 = vmatprep.subr.bf16.mxu0 0
    %657 = vmatpush1.bf16.xpose.msra.mxu0 0
    %658 = vmatprep.subr.bf16.mxu0 0
    %659 = vmatpush1.bf16.xpose.msra.mxu0 0
    %660 = vmatprep.subr.bf16.mxu0 0
    %661 = vmatpush1.bf16.xpose.msra.mxu0 0
    %662 = vmatprep.subr.bf16.mxu0 0
    %663 = vmatpush1.bf16.xpose.msra.mxu0 0
    %664 = vmatprep.subr.bf16.mxu0 0
    %665 = vmatpush1.bf16.xpose.msra.mxu0 0
    %666 = vmatprep.subr.bf16.mxu0 0
    %667 = vmatpush1.bf16.xpose.msra.mxu0 0
    %668 = vmatprep.subr.bf16.mxu0 0
    %669 = vmatpush1.bf16.xpose.msra.mxu0 0
    %670 = vmatprep.subr.bf16.mxu0 0
    %671 = vmatpush1.bf16.xpose.msra.mxu0 0
    %672 = vmatprep.subr.bf16.mxu0 0
    %673 = vmatpush1.bf16.xpose.msra.mxu0 0
    %674 = vmatprep.subr.bf16.mxu0 0
    %675 = vmatpush1.bf16.xpose.msra.mxu0 0
    %676 = vmatprep.subr.bf16.mxu0 0
    %677 = vmatpush1.bf16.xpose.msra.mxu0 0
    %678 = vmatprep.subr.bf16.mxu0 0
    %679 = vmatpush1.bf16.xpose.msra.mxu0 0
    %680 = vmatprep.subr.bf16.mxu0 0
    %681 = vmatpush1.bf16.xpose.msra.mxu0 0
    %682 = vmatprep.subr.bf16.mxu0 0
    %683 = vmatpush1.bf16.xpose.msra.mxu0 0
    %684 = vmatprep.mubr.bf16.mxu0 0
    %685 = vmatmul.mubr.bf16.gmra.mrb[0].mxu0 %v647
    %v686 = vpop.f32.mrb[0].mxu0
    %v687 = vadd.f32 0.0, %v686
    %v688 = vpop.f32.mrb[0].mxu0
    %v689 = vpop.f32.mrb[0].mxu0
    %v690 = vpop.f32.mrb[0].mxu0
    %691 = vdwg.mxu0
    %v692 = vmul.f32 %v687, 0.35355338
    %v693 = vsel %vm339, %v692, -inf
    %694 = vmax.xlane.f32.xlu0 %v693
    %v695 = vpop.xlane.xlu0 %694
    %v696 = vsub.f32 %v692, %v695
    %v697 = vmul.f32 %v696, 1.442695
    %v698 = vpow.pop %v697
    %v699 = vsel %vm339, %v698, 0.0
    %700 = vadd.xlane.f32.xlu0 %v699
    %v701 = vpop.xlane.xlu0 %700
    %v702 = vrcp.pop %v701
    %v703 = vmul.f32 %v698, %v702
    %v704 = vpack.c.bf16 %v703, %v703
    %v705 = vpack.c.bf16 %v639, %v639
    %v707 = vsel %vm339, %v704, 0
    %v710 = vsel %vm356, %v705, 0
    %712 = vmatprep.subr.bf16.mxu0 0
    %713 = vmatpush1.bf16.msra.mxu0 %v710
    %714 = vmatprep.subr.bf16.mxu0 0
    %715 = vmatpush1.bf16.msra.mxu0 0
    %716 = vmatprep.subr.bf16.mxu0 0
    %717 = vmatpush1.bf16.msra.mxu0 0
    %718 = vmatprep.subr.bf16.mxu0 0
    %719 = vmatpush1.bf16.msra.mxu0 0
    %720 = vmatprep.subr.bf16.mxu0 0
    %721 = vmatpush1.bf16.msra.mxu0 0
    %722 = vmatprep.subr.bf16.mxu0 0
    %723 = vmatpush1.bf16.msra.mxu0 0
    %724 = vmatprep.subr.bf16.mxu0 0
    %725 = vmatpush1.bf16.msra.mxu0 0
    %726 = vmatprep.subr.bf16.mxu0 0
    %727 = vmatpush1.bf16.msra.mxu0 0
    %728 = vmatprep.subr.bf16.mxu0 0
    %729 = vmatpush1.bf16.msra.mxu0 0
    %730 = vmatprep.subr.bf16.mxu0 0
    %731 = vmatpush1.bf16.msra.mxu0 0
    %732 = vmatprep.subr.bf16.mxu0 0
    %733 = vmatpush1.bf16.msra.mxu0 0
    %734 = vmatprep.subr.bf16.mxu0 0
    %735 = vmatpush1.bf16.msra.mxu0 0
    %736 = vmatprep.subr.bf16.mxu0 0
    %737 = vmatpush1.bf16.msra.mxu0 0
    %738 = vmatprep.subr.bf16.mxu0 0
    %739 = vmatpush1.bf16.msra.mxu0 0
    %740 = vmatprep.subr.bf16.mxu0 0
    %741 = vmatpush1.bf16.msra.mxu0 0
    %742 = vmatprep.subr.bf16.mxu0 0
    %743 = vmatpush1.bf16.msra.mxu0 0
    %744 = vmatprep.mubr.bf16.mxu0 0
    %745 = vmatmul.mubr.bf16.gmra.mrb[0].mxu0 %v707
    %v746 = vpop.f32.mrb[0].mxu0
    %v747 = vadd.f32 0.0, %v746
    %v748 = vpop.f32.mrb[0].mxu0
    %v749 = vpop.f32.mrb[0].mxu0
    %v750 = vpop.f32.mrb[0].mxu0
    %751 = vdwg.mxu0
    %v752 = vpack.c.bf16 %v747, %v747
    %v754 = vsel %vm142, %v752, 0
    %756 = vmatprep.subr.bf16.mxu0 0
    %757 = vmatpush1.bf16.msra.mxu0 %v409
    %758 = vmatprep.subr.bf16.mxu0 0
    %759 = vmatpush1.bf16.msra.mxu0 %v410
    %760 = vmatprep.subr.bf16.mxu0 0
    %761 = vmatpush1.bf16.msra.mxu0 0
    %762 = vmatprep.subr.bf16.mxu0 0
    %763 = vmatpush1.bf16.msra.mxu0 0
    %764 = vmatprep.subr.bf16.mxu0 0
    %765 = vmatpush1.bf16.msra.mxu0 0
    %766 = vmatprep.subr.bf16.mxu0 0
    %767 = vmatpush1.bf16.msra.mxu0 0
    %768 = vmatprep.subr.bf16.mxu0 0
    %769 = vmatpush1.bf16.msra.mxu0 0
    %770 = vmatprep.subr.bf16.mxu0 0
    %771 = vmatpush1.bf16.msra.mxu0 0
    %772 = vmatprep.subr.bf16.mxu0 0
    %773 = vmatpush1.bf16.msra.mxu0 0
    %774 = vmatprep.subr.bf16.mxu0 0
    %775 = vmatpush1.bf16.msra.mxu0 0
    %776 = vmatprep.subr.bf16.mxu0 0
    %777 = vmatpush1.bf16.msra.mxu0 0
    %778 = vmatprep.subr.bf16.mxu0 0
    %779 = vmatpush1.bf16.msra.mxu0 0
    %780 = vmatprep.subr.bf16.mxu0 0
    %781 = vmatpush1.bf16.msra.mxu0 0
    %782 = vmatprep.subr.bf16.mxu0 0
    %783 = vmatpush1.bf16.msra.mxu0 0
    %784 = vmatprep.subr.bf16.mxu0 0
    %785 = vmatpush1.bf16.msra.mxu0 0
    %786 = vmatprep.subr.bf16.mxu0 0
    %787 = vmatpush1.bf16.msra.mxu0 0
    %788 = vmatprep.mubr.bf16.mxu0 0
    %789 = vmatmul.mubr.bf16.gmra.mrb[0].mxu0 %v754
    %v790 = vpop.f32.mrb[0].mxu0
    %v791 = vadd.f32 0.0, %v790
    %v792 = vpop.f32.mrb[0].mxu0
    %v793 = vpop.f32.mrb[0].mxu0
    %v794 = vpop.f32.mrb[0].mxu0
    %795 = vdwg.mxu0
    %v796 = vpack.c.bf16 %v791, %v791
    %v797 = vld [vmem:[#allocation11] sm:$0xf]
    %v798 = vld [vmem:[#allocation11 + $0x4] sm:$0xf]
    %v799 = vld [vmem:[#allocation11 + $0x8] sm:$0xf]
    %v800 = vld [vmem:[#allocation11 + $0xc] sm:$0xf]
    %v805 = vunpack.c.l.b16 %v797
    %v806 = vunpack.c.l.b16 %v798
    %v807 = vunpack.c.l.b16 %v799
    %v808 = vunpack.c.l.b16 %v800
    %v809 = vpack.c.b16 %v806, %v805
    %v810 = vpack.c.b16 %v808, %v807
    %v814 = vsel %vm142, %v796, 0
    %816 = vmatprep.subr.bf16.mxu0 0
    %817 = vmatpush1.bf16.msra.mxu0 %v809
    %818 = vmatprep.subr.bf16.mxu0 0
    %819 = vmatpush1.bf16.msra.mxu0 %v810
    %820 = vmatprep.subr.bf16.mxu0 0
    %821 = vmatpush1.bf16.msra.mxu0 0
    %822 = vmatprep.subr.bf16.mxu0 0
    %823 = vmatpush1.bf16.msra.mxu0 0
    %824 = vmatprep.subr.bf16.mxu0 0
    %825 = vmatpush1.bf16.msra.mxu0 0
    %826 = vmatprep.subr.bf16.mxu0 0
    %827 = vmatpush1.bf16.msra.mxu0 0
    %828 = vmatprep.subr.bf16.mxu0 0
    %829 = vmatpush1.bf16.msra.mxu0 0
    %830 = vmatprep.subr.bf16.mxu0 0
    %831 = vmatpush1.bf16.msra.mxu0 0
    %832 = vmatprep.subr.bf16.mxu0 0
    %833 = vmatpush1.bf16.msra.mxu0 0
    %834 = vmatprep.subr.bf16.mxu0 0
    %835 = vmatpush1.bf16.msra.mxu0 0
    %836 = vmatprep.subr.bf16.mxu0 0
    %837 = vmatpush1.bf16.msra.mxu0 0
    %838 = vmatprep.subr.bf16.mxu0 0
    %839 = vmatpush1.bf16.msra.mxu0 0
    %840 = vmatprep.subr.bf16.mxu0 0
    %841 = vmatpush1.bf16.msra.mxu0 0
    %842 = vmatprep.subr.bf16.mxu0 0
    %843 = vmatpush1.bf16.msra.mxu0 0
    %844 = vmatprep.subr.bf16.mxu0 0
    %845 = vmatpush1.bf16.msra.mxu0 0
    %846 = vmatprep.subr.bf16.mxu0 0
    %847 = vmatpush1.bf16.msra.mxu0 0
    %848 = vmatprep.mubr.bf16.mxu0 0
    %849 = vmatmul.mubr.bf16.gmra.mrb[0].mxu0 %v814
    %v850 = vpop.f32.mrb[0].mxu0
    %v851 = vadd.f32 0.0, %v850
    %v852 = vpop.f32.mrb[0].mxu0
    %v853 = vpop.f32.mrb[0].mxu0
    %v854 = vpop.f32.mrb[0].mxu0
    %855 = vdwg.mxu0
    %v856 = vpack.c.bf16 %v851, %v851
    %857 = vst.msk [vmem:[#allocation14] sm:$0xf] %vm517, %v856
    // Predicated region
    $region54: #{tpu_custom_call.1} parent=1 // pred_check
      _
    $region55: #{tpu_custom_call.1} parent=1 // pred_check_branch
      %859 = sbr.rel (0) target = $region57
    $region56: #{tpu_custom_call.1} parent=1 // pred_region
      %s861 = ssub.s32 64, 64
      %862 = vsyncadd [#allocation4], %s861
      %s864 = sshll.u32 [#allocation13], 4
      %s865 = int_to_ptr.vmem [resolvable:$true] %s864
      %867 = dma.vmem_to_hbm [thread:$0]  %s865, 64, %s7, [#allocation4]
    $region57: #{tpu_custom_call.1} parent=1 // pred_fallthru
      _
    // Predicated region
    $region58: #{tpu_custom_call.1} parent=1 // pred_check
      _
    $region59: #{tpu_custom_call.1} parent=1 // pred_check_branch
      %869 = sbr.rel (0) target = $region61
    $region60: #{tpu_custom_call.1} parent=1 // pred_region
      %s871 = ssub.s32 64, 64
      %872 = vsyncadd [#allocation15], %s871
      %s874 = sshll.u32 [#allocation14], 4
      %s875 = int_to_ptr.vmem [resolvable:$true] %s874
      %877 = dma.vmem_to_hbm [thread:$0]  %s875, 64, %s8, [#allocation15]
    $region61: #{tpu_custom_call.1} parent=1 // pred_fallthru
      _
    // Predicated region
    $region62: #{tpu_custom_call.1} parent=1 // pred_check
      _
    $region63: #{tpu_custom_call.1} parent=1 // pred_check_branch
      %879 = sbr.rel (0) target = $region65
    $region64: #{tpu_custom_call.1} parent=1 // pred_region
      %880 = dma.done [#allocation4], 64
    $region65: #{tpu_custom_call.1} parent=1 // pred_fallthru
      _
    // Predicated region
    $region66: #{tpu_custom_call.1} parent=1 // pred_check
      _
    $region67: #{tpu_custom_call.1} parent=1 // pred_check_branch
      %882 = sbr.rel (0) target = $region69
    $region68: #{tpu_custom_call.1} parent=1 // pred_region
      %883 = dma.done [#allocation15], 64
    $region69: #{tpu_custom_call.1} parent=1 // pred_fallthru
      _
    %884 = vsyncpa [#allocation3], 1
    %885 = vsyncpa [#allocation6], 1
    %886 = vsyncpa [#allocation9], 1
    %887 = vsyncpa [#allocation12], 1
    %888 = vsyncpa [#allocation4], 1
    %889 = vsyncpa [#allocation15], 1

</llo_original>
